<compile_context>
chip_gen: v7x
topology: tpu7x:2x2x1
jax: 0.10.0
libtpu: 0.0.40
codegen_flags: <defaults>
</compile_context>

<pallas_src>
import jax
import jax.numpy as jnp
from jax.experimental import pallas as pl
from jax.experimental.pallas import tpu as pltpu

LN_EPS = 1e-5        # PyTorch nn.LayerNorm default
TILE_B_MAX = 1024    # MXU-friendly M tile upper bound (multiple of 128)


def _round_up(x, m):
    return ((x + m - 1) // m) * m


def _ceil_div(a, b):
    return -(-a // b)


def _critic_kernel(x_ref,
                   w1_ref, b1_ref, g_ref, beta_ref,
                   w2_ref, b2_ref,
                   w3_ref, b3_ref,
                   w4_ref, b4_ref,
                   o_ref):
    x = x_ref[...]

    # Linear(G,H) + ReLU  (bf16 MXU ingest, f32 accumulation)
    h = jnp.dot(x.astype(jnp.bfloat16), w1_ref[...],
                preferred_element_type=jnp.float32) + b1_ref[...]
    h = jnp.maximum(h, 0.0)

    # LayerNorm(H): two-pass (centered) variance, matching nn.LayerNorm.
    mean = jnp.mean(h, axis=-1, keepdims=True)
    hc = h - mean
    var = jnp.mean(hc * hc, axis=-1, keepdims=True)
    h = hc * jax.lax.rsqrt(var + LN_EPS)
    h = h * g_ref[...] + beta_ref[...]

    # Dropout(0.1): identity in eval mode.
    # TODO(synk): training-mode dropout would need pltpu.prng_seed/prng_random_bits.

    # Linear(H,H) + ReLU
    h = jnp.dot(h.astype(jnp.bfloat16), w2_ref[...],
                preferred_element_type=jnp.float32) + b2_ref[...]
    h = jnp.maximum(h, 0.0)

    # Dropout(0.1): identity in eval mode.

    # Linear(H,H//2) + ReLU
    h = jnp.dot(h.astype(jnp.bfloat16), w3_ref[...],
                preferred_element_type=jnp.float32) + b3_ref[...]
    h = jnp.maximum(h, 0.0)

    # Linear(H//2, 1) as VPU multiply + lane reduction (w4 is a (1, H//2) row);
    # b4 is an SMEM scalar.
    v = jnp.sum(h * w4_ref[...], axis=-1, keepdims=True) + b4_ref[0]
    o_ref[...] = v.astype(o_ref.dtype)


def magec_critic_forward(global_state, params, *, tile_b_max=TILE_B_MAX):
    """Runs the fused critic MLP with a batch-tiled Pallas grid."""
    if global_state.ndim == 1:
        global_state = global_state[None, :]   # matches torch unsqueeze(0)
    x = global_state.astype(jnp.float32)

    B, G = x.shape
    H = params["w1"].shape[1]
    H2 = params["w3"].shape[1]

    # --- Batch tiling --------------------------------------------------------
    B_pad8 = _round_up(max(B, 1), 8)
    num_tiles = max(1, _ceil_div(B_pad8, tile_b_max))
    if B_pad8 >= 16:
        # v7x megacore: guarantee >= 2 (and an even number of) grid steps so
        # both TensorCores get balanced work (harmless on single-TC v5e/v6e).
        num_tiles = max(num_tiles, 2)
        if num_tiles % 2:
            num_tiles += 1
    # Balanced tiles: multiple of 8 (f32 sublane); padding waste is bounded.
    tile_b = _round_up(_ceil_div(B_pad8, num_tiles), 8)
    B_pad = tile_b * num_tiles
    if B_pad != B:
        # Explicit zero padding: padded rows go through rsqrt(eps) harmlessly
        # and are sliced off below. Do not rely on uninitialized memory.
        x = jnp.pad(x, ((0, B_pad - B), (0, 0)))

    grid = (num_tiles,)

    def _resident(shape):
        # Constant index_map -> block DMA'd once, stays VMEM-resident across
        # the grid; Buffered(1) drops the pointless second pipeline buffer.
        return pl.BlockSpec(shape, lambda i: (0, 0),
                            pipeline_mode=pl.Buffered(1))

    in_specs = [
        pl.BlockSpec((tile_b, G), lambda i: (i, 0)),   # streamed input tiles
        _resident((G, H)),  _resident((1, H)),         # w1, b1
        _resident((1, H)),  _resident((1, H)),         # ln gamma, beta
        _resident((H, H)),  _resident((1, H)),         # w2, b2
        _resident((H, H2)), _resident((1, H2)),        # w3, b3
        _resident((1, H2)),                            # w4 row
        pl.BlockSpec(memory_space=pltpu.MemorySpace.SMEM),   # b4 scalar
    ]
    out_specs = pl.BlockSpec((tile_b, 1), lambda i: (i, 0))

    args = (
        x,
        params["w1"], params["b1"], params["ln_g"], params["ln_b"],
        params["w2"], params["b2"],
        params["w3"], params["b3"],
        params["w4"], params["b4"],
    )

    param_bytes = sum(int(v.size) * v.dtype.itemsize for v in params.values())

    # Scoped-VMEM budget: single-buffered resident params, double-buffered
    # input/output tiles, plus a few f32/bf16 activation slabs of the largest
    # intermediate (tile_b x H). Clamped to a range that is safe on
    # v5e/v6e (128 MiB physical) and v7x (64 MiB physical per TC).
    act_bytes = tile_b * (2 * G + 8 * H + 4 * H2 + 8) * 4
    vmem_limit = min(48 << 20, max(32 << 20, int(param_bytes + act_bytes)))

    cost = pl.CostEstimate(
        flops=2 * B_pad * (G * H + H * H + H * H2 + H2),
        transcendentals=B_pad,                       # one rsqrt per row
        bytes_accessed=int(x.size) * x.dtype.itemsize + param_bytes + B_pad * 4,
    )

    out = pl.pallas_call(
        _critic_kernel,
        out_shape=jax.ShapeDtypeStruct((B_pad, 1), jnp.float32),
        grid=grid,
        in_specs=in_specs,
        out_specs=out_specs,
        compiler_params=pltpu.CompilerParams(
            dimension_semantics=("parallel",),       # shards batch across TCs on v7x
            vmem_limit_bytes=vmem_limit,
        ),
        cost_estimate=cost,
    )(*args)

    return out[:B]


def _xavier_uniform(key, fan_in, fan_out):
    bound = jnp.sqrt(6.0 / (fan_in + fan_out))
    # Stored as (in, out): transpose of PyTorch's (out, in); same distribution
    # since xavier_uniform_ is symmetric in fan_in/fan_out.
    return jax.random.uniform(key, (fan_in, fan_out), jnp.float32, -bound, bound)


def init_params(key, global_state_size, hidden_size):
    h2 = hidden_size // 2
    k1, k2, k3, k4 = jax.random.split(key, 4)
    return {
        # Big matmul weights stored bf16 for MXU ingest (f32 accumulation in-kernel).
        "w1": _xavier_uniform(k1, global_state_size, hidden_size).astype(jnp.bfloat16),
        "b1": jnp.zeros((1, hidden_size), jnp.float32),
        "ln_g": jnp.ones((1, hidden_size), jnp.float32),
        "ln_b": jnp.zeros((1, hidden_size), jnp.float32),
        "w2": _xavier_uniform(k2, hidden_size, hidden_size).astype(jnp.bfloat16),
        "b2": jnp.zeros((1, hidden_size), jnp.float32),
        "w3": _xavier_uniform(k3, hidden_size, h2).astype(jnp.bfloat16),
        "b3": jnp.zeros((1, h2), jnp.float32),
        # Final Linear(h2, 1): f32 (1, h2) row, applied as VPU mul + lane reduce.
        "w4": _xavier_uniform(k4, h2, 1).reshape(1, h2).astype(jnp.float32),
        # Scalar bias kept 1-D so it can live in SMEM inside the kernel.
        "b4": jnp.zeros((1,), jnp.float32),
    }


def _reference_forward(x, p):
    """Pure-JAX reference mirroring the kernel's precision (bf16 MXU / f32 acc)."""
    if x.ndim == 1:
        x = x[None, :]
    x = x.astype(jnp.float32)
    h = jnp.dot(x.astype(jnp.bfloat16), p["w1"],
                preferred_element_type=jnp.float32) + p["b1"]
    h = jnp.maximum(h, 0.0)
    mean = jnp.mean(h, axis=-1, keepdims=True)
    hc = h - mean
    var = jnp.mean(hc * hc, axis=-1, keepdims=True)
    h = hc * jax.lax.rsqrt(var + LN_EPS)
    h = h * p["ln_g"] + p["ln_b"]
    h = jnp.maximum(jnp.dot(h.astype(jnp.bfloat16), p["w2"],
                            preferred_element_type=jnp.float32) + p["b2"], 0.0)
    h = jnp.maximum(jnp.dot(h.astype(jnp.bfloat16), p["w3"],
                            preferred_element_type=jnp.float32) + p["b3"], 0.0)
    return jnp.sum(h * p["w4"], axis=-1, keepdims=True) + p["b4"]


def _reference_forward_f32(x, p):
    """Full-f32 reference mirroring the PyTorch forward (eval mode)."""
    if x.ndim == 1:
        x = x[None, :]
    x = x.astype(jnp.float32)
    w1 = p["w1"].astype(jnp.float32)
    w2 = p["w2"].astype(jnp.float32)
    w3 = p["w3"].astype(jnp.float32)
    h = jnp.maximum(x @ w1 + p["b1"], 0.0)
    mean = jnp.mean(h, axis=-1, keepdims=True)
    var = jnp.mean((h - mean) ** 2, axis=-1, keepdims=True)
    h = (h - mean) / jnp.sqrt(var + LN_EPS) * p["ln_g"] + p["ln_b"]
    h = jnp.maximum(h @ w2 + p["b2"], 0.0)
    h = jnp.maximum(h @ w3 + p["b3"], 0.0)
    return jnp.sum(h * p["w4"], axis=-1, keepdims=True) + p["b4"]


if __name__ == "__main__":
    GLOBAL_STATE_SIZE = 32
    HIDDEN_SIZE = 128   # small stand-in for the default 512
    BATCH = 2

    key = jax.random.PRNGKey(0)
    k_param, k_x, k_x2 = jax.random.split(key, 3)
    params = init_params(k_param, GLOBAL_STATE_SIZE, HIDDEN_SIZE)

    # --- single-tile path (B=2 -> one 8-row tile) ---------------------------
    x = jax.random.normal(k_x, (BATCH, GLOBAL_STATE_SIZE), jnp.float32)
    out = jax.block_until_ready(magec_critic_forward(x, params))
    assert out.shape == (BATCH, 1), out.shape

    ref = _reference_forward(x, params)
    assert jnp.allclose(out, ref, atol=1e-4, rtol=1e-4), (out, ref)

    ref32 = _reference_forward_f32(x, params)
    assert jnp.allclose(out, ref32, atol=1e-1, rtol=1e-1), (out, ref32)

    # --- multi-tile path (B=20 -> 2 balanced 16-row tiles, exercises the
    #     "parallel" grid used for v7x megacore sharding) ---------------------
    x2 = jax.random.normal(k_x2, (20, GLOBAL_STATE_SIZE), jnp.float32)
    out2 = jax.block_until_ready(magec_critic_forward(x2, params))
    assert out2.shape == (20, 1), out2.shape
    ref2 = _reference_forward(x2, params)
    assert jnp.allclose(out2, ref2, atol=1e-4, rtol=1e-4), (out2, ref2)

    # --- 1-D input path (dim()==1 -> unsqueeze(0)) ---------------------------
    out1d = jax.block_until_ready(magec_critic_forward(x[0], params))
    assert out1d.shape == (1, 1)
    assert jnp.allclose(out1d, ref[:1], atol=1e-4, rtol=1e-4)

    print("KERNEL_OK")
</pallas_src>

<mosaic_0001>
module attributes {stable_mosaic.version = 11 : i64} {
  func.func @_critic_kernel(%arg0: i32, %arg1: memref<8x32xf32, #tpu.memory_space<vmem>>, %arg2: memref<32x128xbf16, #tpu.memory_space<vmem>>, %arg3: memref<1x128xf32, #tpu.memory_space<vmem>>, %arg4: memref<1x128xf32, #tpu.memory_space<vmem>>, %arg5: memref<1x128xf32, #tpu.memory_space<vmem>>, %arg6: memref<128x128xbf16, #tpu.memory_space<vmem>>, %arg7: memref<1x128xf32, #tpu.memory_space<vmem>>, %arg8: memref<128x64xbf16, #tpu.memory_space<vmem>>, %arg9: memref<1x64xf32, #tpu.memory_space<vmem>>, %arg10: memref<1x64xf32, #tpu.memory_space<vmem>>, %arg11: memref<1xf32, #tpu.memory_space<smem>>, %arg12: memref<8x1xf32, #tpu.memory_space<vmem>>) attributes {dimension_semantics = [#tpu.dimension_semantics<parallel>], iteration_bounds = array<i64: 1>, scalar_prefetch = 0 : i64, scratch_operands = 0 : i64, tpu.core_type = #tpu.core_type<tc>, window_params = [{transform_indices = @transform_0, window_bounds = array<i64: 8, 32>}, {pipeline_mode = #tpu.pipeline_mode<synchronous>, transform_indices = @transform_1, window_bounds = array<i64: 32, 128>}, {pipeline_mode = #tpu.pipeline_mode<synchronous>, transform_indices = @transform_2, window_bounds = array<i64: 1, 128>}, {pipeline_mode = #tpu.pipeline_mode<synchronous>, transform_indices = @transform_3, window_bounds = array<i64: 1, 128>}, {pipeline_mode = #tpu.pipeline_mode<synchronous>, transform_indices = @transform_4, window_bounds = array<i64: 1, 128>}, {pipeline_mode = #tpu.pipeline_mode<synchronous>, transform_indices = @transform_5, window_bounds = array<i64: 128, 128>}, {pipeline_mode = #tpu.pipeline_mode<synchronous>, transform_indices = @transform_6, window_bounds = array<i64: 1, 128>}, {pipeline_mode = #tpu.pipeline_mode<synchronous>, transform_indices = @transform_7, window_bounds = array<i64: 128, 64>}, {pipeline_mode = #tpu.pipeline_mode<synchronous>, transform_indices = @transform_8, window_bounds = array<i64: 1, 64>}, {pipeline_mode = #tpu.pipeline_mode<synchronous>, transform_indices = @transform_9, window_bounds = array<i64: 1, 64>}, {transform_indices = @transform_10, window_bounds = array<i64: 1>}, {transform_indices = @transform_11, window_bounds = array<i64: 8, 1>}]} {
    %c0 = arith.constant 0 : index
    %c0_0 = arith.constant 0 : index
    %0 = vector.load %arg1[%c0, %c0_0] : memref<8x32xf32, #tpu.memory_space<vmem>>, vector<8x32xf32>
    %1 = arith.truncf %0 : vector<8x32xf32> to vector<8x32xbf16>
    %c0_1 = arith.constant 0 : index
    %c0_2 = arith.constant 0 : index
    %2 = vector.load %arg2[%c0_1, %c0_2] : memref<32x128xbf16, #tpu.memory_space<vmem>>, vector<32x128xbf16>
    %cst = arith.constant dense<0.000000e+00> : vector<8x128xf32>
    %3 = tpu.matmul %1, %2, %cst {dimension_numbers = #tpu.dot_dimension_numbers<[1], [0], [0], [1], [0, 0, 1, 1], [], []>} : vector<8x32xbf16>, vector<32x128xbf16>, vector<8x128xf32> -> vector<8x128xf32>
    %c0_3 = arith.constant 0 : index
    %c0_4 = arith.constant 0 : index
    %4 = vector.load %arg3[%c0_3, %c0_4] : memref<1x128xf32, #tpu.memory_space<vmem>>, vector<1x128xf32>
    %5 = vector.broadcast %4 : vector<1x128xf32> to vector<8x128xf32>
    %6 = arith.addf %3, %5 : vector<8x128xf32>
    %cst_5 = arith.constant 0.000000e+00 : f32
    %7 = vector.broadcast %cst_5 : f32 to vector<8x128xf32>
    %8 = arith.maximumf %6, %7 : vector<8x128xf32>
    %cst_6 = arith.constant dense<0.000000e+00> : vector<8xf32>
    %9 = vector.multi_reduction <add>, %8, %cst_6 [1] : vector<8x128xf32> to vector<8xf32>
    %10 = vector.shape_cast %9 : vector<8xf32> to vector<8x1xf32>
    %cst_7 = arith.constant 1.280000e+02 : f32
    %11 = vector.broadcast %cst_7 : f32 to vector<8x1xf32>
    %12 = arith.divf %10, %11 : vector<8x1xf32>
    %13 = vector.broadcast %12 : vector<8x1xf32> to vector<8x128xf32>
    %14 = arith.subf %8, %13 : vector<8x128xf32>
    %15 = arith.mulf %14, %14 : vector<8x128xf32>
    %cst_8 = arith.constant dense<0.000000e+00> : vector<8xf32>
    %16 = vector.multi_reduction <add>, %15, %cst_8 [1] : vector<8x128xf32> to vector<8xf32>
    %17 = vector.shape_cast %16 : vector<8xf32> to vector<8x1xf32>
    %cst_9 = arith.constant 1.280000e+02 : f32
    %18 = vector.broadcast %cst_9 : f32 to vector<8x1xf32>
    %19 = arith.divf %17, %18 : vector<8x1xf32>
    %cst_10 = arith.constant 9.99999974E-6 : f32
    %20 = vector.broadcast %cst_10 : f32 to vector<8x1xf32>
    %21 = arith.addf %19, %20 : vector<8x1xf32>
    %22 = math.rsqrt %21 : vector<8x1xf32>
    %23 = vector.broadcast %22 : vector<8x1xf32> to vector<8x128xf32>
    %24 = arith.mulf %14, %23 : vector<8x128xf32>
    %c0_11 = arith.constant 0 : index
    %c0_12 = arith.constant 0 : index
    %25 = vector.load %arg4[%c0_11, %c0_12] : memref<1x128xf32, #tpu.memory_space<vmem>>, vector<1x128xf32>
    %26 = vector.broadcast %25 : vector<1x128xf32> to vector<8x128xf32>
    %27 = arith.mulf %24, %26 : vector<8x128xf32>
    %c0_13 = arith.constant 0 : index
    %c0_14 = arith.constant 0 : index
    %28 = vector.load %arg5[%c0_13, %c0_14] : memref<1x128xf32, #tpu.memory_space<vmem>>, vector<1x128xf32>
    %29 = vector.broadcast %28 : vector<1x128xf32> to vector<8x128xf32>
    %30 = arith.addf %27, %29 : vector<8x128xf32>
    %31 = arith.truncf %30 : vector<8x128xf32> to vector<8x128xbf16>
    %c0_15 = arith.constant 0 : index
    %c0_16 = arith.constant 0 : index
    %32 = vector.load %arg6[%c0_15, %c0_16] : memref<128x128xbf16, #tpu.memory_space<vmem>>, vector<128x128xbf16>
    %cst_17 = arith.constant dense<0.000000e+00> : vector<8x128xf32>
    %33 = tpu.matmul %31, %32, %cst_17 {dimension_numbers = #tpu.dot_dimension_numbers<[1], [0], [0], [1], [0, 0, 1, 1], [], []>} : vector<8x128xbf16>, vector<128x128xbf16>, vector<8x128xf32> -> vector<8x128xf32>
    %c0_18 = arith.constant 0 : index
    %c0_19 = arith.constant 0 : index
    %34 = vector.load %arg7[%c0_18, %c0_19] : memref<1x128xf32, #tpu.memory_space<vmem>>, vector<1x128xf32>
    %35 = vector.broadcast %34 : vector<1x128xf32> to vector<8x128xf32>
    %36 = arith.addf %33, %35 : vector<8x128xf32>
    %cst_20 = arith.constant 0.000000e+00 : f32
    %37 = vector.broadcast %cst_20 : f32 to vector<8x128xf32>
    %38 = arith.maximumf %36, %37 : vector<8x128xf32>
    %39 = arith.truncf %38 : vector<8x128xf32> to vector<8x128xbf16>
    %c0_21 = arith.constant 0 : index
    %c0_22 = arith.constant 0 : index
    %40 = vector.load %arg8[%c0_21, %c0_22] : memref<128x64xbf16, #tpu.memory_space<vmem>>, vector<128x64xbf16>
    %cst_23 = arith.constant dense<0.000000e+00> : vector<8x64xf32>
    %41 = tpu.matmul %39, %40, %cst_23 {dimension_numbers = #tpu.dot_dimension_numbers<[1], [0], [0], [1], [0, 0, 1, 1], [], []>} : vector<8x128xbf16>, vector<128x64xbf16>, vector<8x64xf32> -> vector<8x64xf32>
    %c0_24 = arith.constant 0 : index
    %c0_25 = arith.constant 0 : index
    %42 = vector.load %arg9[%c0_24, %c0_25] : memref<1x64xf32, #tpu.memory_space<vmem>>, vector<1x64xf32>
    %43 = vector.broadcast %42 : vector<1x64xf32> to vector<8x64xf32>
    %44 = arith.addf %41, %43 : vector<8x64xf32>
    %cst_26 = arith.constant 0.000000e+00 : f32
    %45 = vector.broadcast %cst_26 : f32 to vector<8x64xf32>
    %46 = arith.maximumf %44, %45 : vector<8x64xf32>
    %c0_27 = arith.constant 0 : index
    %c0_28 = arith.constant 0 : index
    %47 = vector.load %arg10[%c0_27, %c0_28] : memref<1x64xf32, #tpu.memory_space<vmem>>, vector<1x64xf32>
    %48 = vector.broadcast %47 : vector<1x64xf32> to vector<8x64xf32>
    %49 = arith.mulf %46, %48 : vector<8x64xf32>
    %cst_29 = arith.constant dense<0.000000e+00> : vector<8xf32>
    %50 = vector.multi_reduction <add>, %49, %cst_29 [1] : vector<8x64xf32> to vector<8xf32>
    %51 = vector.shape_cast %50 : vector<8xf32> to vector<8x1xf32>
    %c0_30 = arith.constant 0 : index
    %52 = memref.load %arg11[%c0_30] : memref<1xf32, #tpu.memory_space<smem>>
    %53 = vector.broadcast %52 : f32 to vector<8x1xf32>
    %54 = arith.addf %51, %53 : vector<8x1xf32>
    %c0_31 = arith.constant 0 : index
    %c0_32 = arith.constant 0 : index
    %55 = vector.load %arg12[%c0_31, %c0_32] : memref<8x1xf32, #tpu.memory_space<vmem>>, vector<8x1xf32>
    tpu.vector_store %arg12[%c0_31, %c0_32], %54 {strides = array<i32>} : memref<8x1xf32, #tpu.memory_space<vmem>>, vector<8x1xf32>,
    return
  }
  func.func @transform_0(%arg0: i32) -> (i32, i32) {
    %c0_i32 = arith.constant 0 : i32
    %c0_i32_0 = arith.constant 0 : i32
    return %arg0, %c0_i32 : i32, i32
  }
  func.func @transform_1(%arg0: i32) -> (i32, i32) {
    %c0_i32 = arith.constant 0 : i32
    %c0_i32_0 = arith.constant 0 : i32
    %c0_i32_1 = arith.constant 0 : i32
    return %c0_i32, %c0_i32_0 : i32, i32
  }
  func.func @transform_2(%arg0: i32) -> (i32, i32) {
    %c0_i32 = arith.constant 0 : i32
    %c0_i32_0 = arith.constant 0 : i32
    %c0_i32_1 = arith.constant 0 : i32
    return %c0_i32, %c0_i32_0 : i32, i32
  }
  func.func @transform_3(%arg0: i32) -> (i32, i32) {
    %c0_i32 = arith.constant 0 : i32
    %c0_i32_0 = arith.constant 0 : i32
    %c0_i32_1 = arith.constant 0 : i32
    return %c0_i32, %c0_i32_0 : i32, i32
  }
  func.func @transform_4(%arg0: i32) -> (i32, i32) {
    %c0_i32 = arith.constant 0 : i32
    %c0_i32_0 = arith.constant 0 : i32
    %c0_i32_1 = arith.constant 0 : i32
    return %c0_i32, %c0_i32_0 : i32, i32
  }
  func.func @transform_5(%arg0: i32) -> (i32, i32) {
    %c0_i32 = arith.constant 0 : i32
    %c0_i32_0 = arith.constant 0 : i32
    %c0_i32_1 = arith.constant 0 : i32
    return %c0_i32, %c0_i32_0 : i32, i32
  }
  func.func @transform_6(%arg0: i32) -> (i32, i32) {
    %c0_i32 = arith.constant 0 : i32
    %c0_i32_0 = arith.constant 0 : i32
    %c0_i32_1 = arith.constant 0 : i32
    return %c0_i32, %c0_i32_0 : i32, i32
  }
  func.func @transform_7(%arg0: i32) -> (i32, i32) {
    %c0_i32 = arith.constant 0 : i32
    %c0_i32_0 = arith.constant 0 : i32
    %c0_i32_1 = arith.constant 0 : i32
    return %c0_i32, %c0_i32_0 : i32, i32
  }
  func.func @transform_8(%arg0: i32) -> (i32, i32) {
    %c0_i32 = arith.constant 0 : i32
    %c0_i32_0 = arith.constant 0 : i32
    %c0_i32_1 = arith.constant 0 : i32
    return %c0_i32, %c0_i32_0 : i32, i32
  }
  func.func @transform_9(%arg0: i32) -> (i32, i32) {
    %c0_i32 = arith.constant 0 : i32
    %c0_i32_0 = arith.constant 0 : i32
    %c0_i32_1 = arith.constant 0 : i32
    return %c0_i32, %c0_i32_0 : i32, i32
  }
  func.func @transform_10(%arg0: i32) -> i32 {
    %c0_i32 = arith.constant 0 : i32
    %c0_i32_0 = arith.constant 0 : i32
    return %c0_i32 : i32
  }
  func.func @transform_11(%arg0: i32) -> (i32, i32) {
    %c0_i32 = arith.constant 0 : i32
    %c0_i32_0 = arith.constant 0 : i32
    return %arg0, %c0_i32 : i32, i32
  }
}

</mosaic_0001>

<llo_original>
// kernel: tpu_custom_call.1
$region0: #{tpu_custom_call.1}
  #allocation0 [shape = 'u32[]', space=smem, size = 0x4, offset = 0x4, fixed_abs, tag = 'smem constant byte address 0x4 - core index']
  #allocation1 [shape = 'u32[144,128]{1,0:T(1,128)}', space=vmem, size = 0x12000, scoped, tag = 'internal scratch']
  #allocation2 [shape = 'f32[1]{0:T(128)S(6)}', space=smem, size = 0x200, scoped, tag = 'scoped memory for tpu_custom_call.1']
  %s0 = inlined_call_operand.vmem [shape: f32[8,32], index: 0, kind: input, shape index: {}]
  %s1 = inlined_call_operand.vmem [shape: bf16[32,128], index: 1, kind: input, shape index: {}]
  %s2 = inlined_call_operand.vmem [shape: f32[1,128], index: 2, kind: input, shape index: {}]
  %s3 = inlined_call_operand.vmem [shape: f32[1,128], index: 3, kind: input, shape index: {}]
  %s4 = inlined_call_operand.vmem [shape: f32[1,128], index: 4, kind: input, shape index: {}]
  %s5 = inlined_call_operand.vmem [shape: bf16[128,128], index: 5, kind: input, shape index: {}]
  %s6 = inlined_call_operand.vmem [shape: f32[1,128], index: 6, kind: input, shape index: {}]
  %s7 = inlined_call_operand.vmem [shape: bf16[128,64], index: 7, kind: input, shape index: {}]
  %s8 = inlined_call_operand.vmem [shape: f32[1,64], index: 8, kind: input, shape index: {}]
  %s9 = inlined_call_operand.vmem [shape: f32[1,64], index: 9, kind: input, shape index: {}]
  %s10 = inlined_call_operand.<no memory space> [shape: f32[1], index: 10, kind: input, shape index: {}]
  %s11 = inlined_call_operand.vmem [shape: f32[8,1], index: 11, kind: output, shape index: {}]
  %s12 = sld [smem:[#allocation0]]
  $region54: #{tpu_custom_call.1} parent=0
    _
  %s14 = ssub.s32 1, %s12
  %s15 = scalar_select 0, %s14, %s12
  %16 = sst [smem:[#allocation2]] %s10
  // Predicated region
  $region2: #{tpu_custom_call.1} parent=0 // pred_check
    _
  $region3: #{tpu_custom_call.1} parent=0 // pred_check_branch
    %18 = sbr.rel (0) target = $region5
  $region4: #{tpu_custom_call.1} parent=0 // pred_region
    _
  $region5: #{tpu_custom_call.1} parent=0 // pred_fallthru
    _
  // Predicated region
  $region6: #{tpu_custom_call.1} parent=0 // pred_check
    _
  $region7: #{tpu_custom_call.1} parent=0 // pred_check_branch
    %20 = sbr.rel (0) target = $region9
  $region8: #{tpu_custom_call.1} parent=0 // pred_region
    _
  $region9: #{tpu_custom_call.1} parent=0 // pred_fallthru
    _
  // Predicated region
  $region10: #{tpu_custom_call.1} parent=0 // pred_check
    _
  $region11: #{tpu_custom_call.1} parent=0 // pred_check_branch
    %22 = sbr.rel (0) target = $region13
  $region12: #{tpu_custom_call.1} parent=0 // pred_region
    _
  $region13: #{tpu_custom_call.1} parent=0 // pred_fallthru
    _
  // Predicated region
  $region14: #{tpu_custom_call.1} parent=0 // pred_check
    _
  $region15: #{tpu_custom_call.1} parent=0 // pred_check_branch
    %24 = sbr.rel (0) target = $region17
  $region16: #{tpu_custom_call.1} parent=0 // pred_region
    _
  $region17: #{tpu_custom_call.1} parent=0 // pred_fallthru
    _
  // Predicated region
  $region18: #{tpu_custom_call.1} parent=0 // pred_check
    _
  $region19: #{tpu_custom_call.1} parent=0 // pred_check_branch
    %26 = sbr.rel (0) target = $region21
  $region20: #{tpu_custom_call.1} parent=0 // pred_region
    _
  $region21: #{tpu_custom_call.1} parent=0 // pred_fallthru
    _
  // Predicated region
  $region22: #{tpu_custom_call.1} parent=0 // pred_check
    _
  $region23: #{tpu_custom_call.1} parent=0 // pred_check_branch
    %28 = sbr.rel (0) target = $region25
  $region24: #{tpu_custom_call.1} parent=0 // pred_region
    _
  $region25: #{tpu_custom_call.1} parent=0 // pred_fallthru
    _
  // Predicated region
  $region26: #{tpu_custom_call.1} parent=0 // pred_check
    _
  $region27: #{tpu_custom_call.1} parent=0 // pred_check_branch
    %30 = sbr.rel (0) target = $region29
  $region28: #{tpu_custom_call.1} parent=0 // pred_region
    _
  $region29: #{tpu_custom_call.1} parent=0 // pred_fallthru
    _
  // Predicated region
  $region30: #{tpu_custom_call.1} parent=0 // pred_check
    _
  $region31: #{tpu_custom_call.1} parent=0 // pred_check_branch
    %32 = sbr.rel (0) target = $region33
  $region32: #{tpu_custom_call.1} parent=0 // pred_region
    _
  $region33: #{tpu_custom_call.1} parent=0 // pred_fallthru
    _
  // Predicated region
  $region34: #{tpu_custom_call.1} parent=0 // pred_check
    _
  $region35: #{tpu_custom_call.1} parent=0 // pred_check_branch
    %34 = sbr.rel (0) target = $region37
  $region36: #{tpu_custom_call.1} parent=0 // pred_region
    _
  $region37: #{tpu_custom_call.1} parent=0 // pred_fallthru
    _
  // Predicated region
  $region38: #{tpu_custom_call.1} parent=0 // pred_check
    _
  $region39: #{tpu_custom_call.1} parent=0 // pred_check_branch
    %36 = sbr.rel (0) target = $region41
  $region40: #{tpu_custom_call.1} parent=0 // pred_region
    _
  $region41: #{tpu_custom_call.1} parent=0 // pred_fallthru
    _
  // Predicated region
  $region42: #{tpu_custom_call.1} parent=0 // pred_check
    _
  $region43: #{tpu_custom_call.1} parent=0 // pred_check_branch
    %38 = sbr.rel (0) target = $region45
  $region44: #{tpu_custom_call.1} parent=0 // pred_region
    _
  $region45: #{tpu_custom_call.1} parent=0 // pred_fallthru
    _
  %v40 = vld [vmem:[%s0] sm:$0xff]
  %v41 = vpack.c.bf16 %v40, %v40
  %v42 = vld [vmem:[%s1] sm:$0xf]
  %v43 = vld [vmem:[%s1 + $0x4] sm:$0xf]
  %v44 = vld [vmem:[%s1 + $0x8] sm:$0xf]
  %v45 = vld [vmem:[%s1 + $0xc] sm:$0xf]
  %v46 = vld [vmem:[%s2] sm:$0x1]
  %v48 = vlaneseq
  %v49 = vshrl.u32 %v48, 7
  %v50 = vsub.s32 0, %v49
  %v51 = vrot.slane %v46, %v50
  %v57 = vunpack.c.l.b16 %v42
  %v58 = vunpack.c.l.b16 %v43
  %v59 = vunpack.c.l.b16 %v44
  %v60 = vunpack.c.l.b16 %v45
  %v61 = vpack.c.b16 %v58, %v57
  %v62 = vpack.c.b16 %v60, %v59
  %vm65 = vcmask 261120
  %v67 = vsel %vm65, %v41, 0
  %69 = vmatprep.subr.bf16.mxu0 0
  %70 = vmatpush1.bf16.msra.mxu0 %v61
  %71 = vmatprep.subr.bf16.mxu0 0
  %72 = vmatpush1.bf16.msra.mxu0 %v62
  %73 = vmatprep.subr.bf16.mxu0 0
  %74 = vmatpush1.bf16.msra.mxu0 0
  %75 = vmatprep.subr.bf16.mxu0 0
  %76 = vmatpush1.bf16.msra.mxu0 0
  %77 = vmatprep.subr.bf16.mxu0 0
  %78 = vmatpush1.bf16.msra.mxu0 0
  %79 = vmatprep.subr.bf16.mxu0 0
  %80 = vmatpush1.bf16.msra.mxu0 0
  %81 = vmatprep.subr.bf16.mxu0 0
  %82 = vmatpush1.bf16.msra.mxu0 0
  %83 = vmatprep.subr.bf16.mxu0 0
  %84 = vmatpush1.bf16.msra.mxu0 0
  %85 = vmatprep.subr.bf16.mxu0 0
  %86 = vmatpush1.bf16.msra.mxu0 0
  %87 = vmatprep.subr.bf16.mxu0 0
  %88 = vmatpush1.bf16.msra.mxu0 0
  %89 = vmatprep.subr.bf16.mxu0 0
  %90 = vmatpush1.bf16.msra.mxu0 0
  %91 = vmatprep.subr.bf16.mxu0 0
  %92 = vmatpush1.bf16.msra.mxu0 0
  %93 = vmatprep.subr.bf16.mxu0 0
  %94 = vmatpush1.bf16.msra.mxu0 0
  %95 = vmatprep.subr.bf16.mxu0 0
  %96 = vmatpush1.bf16.msra.mxu0 0
  %97 = vmatprep.subr.bf16.mxu0 0
  %98 = vmatpush1.bf16.msra.mxu0 0
  %99 = vmatprep.subr.bf16.mxu0 0
  %100 = vmatpush1.bf16.msra.mxu0 0
  %101 = vmatprep.mubr.bf16.mxu0 0
  %102 = vmatmul.mubr.bf16.gmra.mrb[0].mxu0 %v67
  %v103 = vpop.f32.mrb[0].mxu0
  %v104 = vadd.f32 %v51, %v103
  %v105 = vpop.f32.mrb[0].mxu0
  %v106 = vpop.f32.mrb[0].mxu0
  %v107 = vpop.f32.mrb[0].mxu0
  %108 = vdwg.mxu0
  %v109 = vmax.f32 %v104, 0.0
  %110 = vadd.xlane.f32.xlu0 %v109
  %v111 = vpop.xlane.xlu0 %110
  %v112 = vrcp.pop 128.0
  %v113 = vmul.f32 %v111, %v112
  %v114 = vsub.f32 %v109, %v113
  %v115 = vmul.f32 %v114, %v114
  %116 = vadd.xlane.f32.xlu0 %v115
  %v117 = vpop.xlane.xlu0 %116
  %v118 = vmul.f32 %v117, %v112
  %v119 = vadd.f32 %v118, 1e-05
  %v120 = vrsqrt.pop %v119
  %v121 = vmul.f32 %v114, %v120
  %v122 = vld [vmem:[%s3] sm:$0x1]
  %v124 = vlaneseq
  %v125 = vshrl.u32 %v124, 7
  %v126 = vsub.s32 0, %v125
  %v127 = vrot.slane %v122, %v126
  %v129 = vmul.f32 %v121, %v127
  %v130 = vld [vmem:[%s4] sm:$0x1]
  %v132 = vlaneseq
  %v133 = vshrl.u32 %v132, 7
  %v134 = vsub.s32 0, %v133
  %v135 = vrot.slane %v130, %v134
  %v137 = vadd.f32 %v129, %v135
  %v138 = vpack.c.bf16 %v137, %v137
  %v139 = vld [vmem:[%s5] sm:$0xf]
  %v140 = vld [vmem:[%s5 + $0x4] sm:$0xf]
  %v141 = vld [vmem:[%s5 + $0x8] sm:$0xf]
  %v142 = vld [vmem:[%s5 + $0xc] sm:$0xf]
  %v143 = vld [vmem:[%s5 + $0x10] sm:$0xf]
  %v144 = vld [vmem:[%s5 + $0x14] sm:$0xf]
  %v145 = vld [vmem:[%s5 + $0x18] sm:$0xf]
  %v146 = vld [vmem:[%s5 + $0x1c] sm:$0xf]
  %v147 = vld [vmem:[%s5 + $0x20] sm:$0xf]
  %v148 = vld [vmem:[%s5 + $0x24] sm:$0xf]
  %v149 = vld [vmem:[%s5 + $0x28] sm:$0xf]
  %v150 = vld [vmem:[%s5 + $0x2c] sm:$0xf]
  %v151 = vld [vmem:[%s5 + $0x30] sm:$0xf]
  %v152 = vld [vmem:[%s5 + $0x34] sm:$0xf]
  %v153 = vld [vmem:[%s5 + $0x38] sm:$0xf]
  %v154 = vld [vmem:[%s5 + $0x3c] sm:$0xf]
  %v155 = vld [vmem:[%s6] sm:$0x1]
  %v157 = vlaneseq
  %v158 = vshrl.u32 %v157, 7
  %v159 = vsub.s32 0, %v158
  %v160 = vrot.slane %v155, %v159
  %v178 = vunpack.c.l.b16 %v139
  %v179 = vunpack.c.l.b16 %v140
  %v180 = vunpack.c.l.b16 %v141
  %v181 = vunpack.c.l.b16 %v142
  %v182 = vunpack.c.l.b16 %v143
  %v183 = vunpack.c.l.b16 %v144
  %v184 = vunpack.c.l.b16 %v145
  %v185 = vunpack.c.l.b16 %v146
  %v186 = vunpack.c.l.b16 %v147
  %v187 = vunpack.c.l.b16 %v148
  %v188 = vunpack.c.l.b16 %v149
  %v189 = vunpack.c.l.b16 %v150
  %v190 = vunpack.c.l.b16 %v151
  %v191 = vunpack.c.l.b16 %v152
  %v192 = vunpack.c.l.b16 %v153
  %v193 = vunpack.c.l.b16 %v154
  %v194 = vpack.c.b16 %v179, %v178
  %v195 = vpack.c.b16 %v181, %v180
  %v196 = vpack.c.b16 %v183, %v182
  %v197 = vpack.c.b16 %v185, %v184
  %v198 = vpack.c.b16 %v187, %v186
  %v199 = vpack.c.b16 %v189, %v188
  %v200 = vpack.c.b16 %v191, %v190
  %v201 = vpack.c.b16 %v193, %v192
  %210 = vmatprep.subr.bf16.mxu0 0
  %211 = vmatpush1.bf16.msra.mxu0 %v194
  %212 = vmatprep.subr.bf16.mxu0 0
  %213 = vmatpush1.bf16.msra.mxu0 %v195
  %214 = vmatprep.subr.bf16.mxu0 0
  %215 = vmatpush1.bf16.msra.mxu0 %v196
  %216 = vmatprep.subr.bf16.mxu0 0
  %217 = vmatpush1.bf16.msra.mxu0 %v197
  %218 = vmatprep.subr.bf16.mxu0 0
  %219 = vmatpush1.bf16.msra.mxu0 %v198
  %220 = vmatprep.subr.bf16.mxu0 0
  %221 = vmatpush1.bf16.msra.mxu0 %v199
  %222 = vmatprep.subr.bf16.mxu0 0
  %223 = vmatpush1.bf16.msra.mxu0 %v200
  %224 = vmatprep.subr.bf16.mxu0 0
  %225 = vmatpush1.bf16.msra.mxu0 %v201
  %226 = vmatprep.subr.bf16.mxu0 0
  %227 = vmatpush1.bf16.msra.mxu0 0
  %228 = vmatprep.subr.bf16.mxu0 0
  %229 = vmatpush1.bf16.msra.mxu0 0
  %230 = vmatprep.subr.bf16.mxu0 0
  %231 = vmatpush1.bf16.msra.mxu0 0
  %232 = vmatprep.subr.bf16.mxu0 0
  %233 = vmatpush1.bf16.msra.mxu0 0
  %234 = vmatprep.subr.bf16.mxu0 0
  %235 = vmatpush1.bf16.msra.mxu0 0
  %236 = vmatprep.subr.bf16.mxu0 0
  %237 = vmatpush1.bf16.msra.mxu0 0
  %238 = vmatprep.subr.bf16.mxu0 0
  %239 = vmatpush1.bf16.msra.mxu0 0
  %240 = vmatprep.subr.bf16.mxu0 0
  %241 = vmatpush1.bf16.msra.mxu0 0
  %242 = vmatprep.mubr.bf16.mxu0 0
  %243 = vmatmul.mubr.bf16.gmra.mrb[0].mxu0 %v138
  %v244 = vpop.f32.mrb[0].mxu0
  %v245 = vadd.f32 %v160, %v244
  %v246 = vpop.f32.mrb[0].mxu0
  %v247 = vpop.f32.mrb[0].mxu0
  %v248 = vpop.f32.mrb[0].mxu0
  %249 = vdwg.mxu0
  %v250 = vmax.f32 %v245, 0.0
  %v251 = vpack.c.bf16 %v250, %v250
  %v252 = vld [vmem:[%s7] sm:$0xf]
  %v253 = vld [vmem:[%s7 + $0x4] sm:$0xf]
  %v254 = vld [vmem:[%s7 + $0x8] sm:$0xf]
  %v255 = vld [vmem:[%s7 + $0xc] sm:$0xf]
  %v256 = vld [vmem:[%s7 + $0x10] sm:$0xf]
  %v257 = vld [vmem:[%s7 + $0x14] sm:$0xf]
  %v258 = vld [vmem:[%s7 + $0x18] sm:$0xf]
  %v259 = vld [vmem:[%s7 + $0x1c] sm:$0xf]
  %v260 = vld [vmem:[%s7 + $0x20] sm:$0xf]
  %v261 = vld [vmem:[%s7 + $0x24] sm:$0xf]
  %v262 = vld [vmem:[%s7 + $0x28] sm:$0xf]
  %v263 = vld [vmem:[%s7 + $0x2c] sm:$0xf]
  %v264 = vld [vmem:[%s7 + $0x30] sm:$0xf]
  %v265 = vld [vmem:[%s7 + $0x34] sm:$0xf]
  %v266 = vld [vmem:[%s7 + $0x38] sm:$0xf]
  %v267 = vld [vmem:[%s7 + $0x3c] sm:$0xf]
  %v268 = vld [vmem:[%s8] sm:$0x1]
  %v270 = vlaneseq
  %v271 = vshrl.u32 %v270, 7
  %v272 = vsub.s32 0, %v271
  %v273 = vrot.slane %v268, %v272
  %v291 = vunpack.c.l.b16 %v252
  %v292 = vunpack.c.l.b16 %v253
  %v293 = vunpack.c.l.b16 %v254
  %v294 = vunpack.c.l.b16 %v255
  %v295 = vunpack.c.l.b16 %v256
  %v296 = vunpack.c.l.b16 %v257
  %v297 = vunpack.c.l.b16 %v258
  %v298 = vunpack.c.l.b16 %v259
  %v299 = vunpack.c.l.b16 %v260
  %v300 = vunpack.c.l.b16 %v261
  %v301 = vunpack.c.l.b16 %v262
  %v302 = vunpack.c.l.b16 %v263
  %v303 = vunpack.c.l.b16 %v264
  %v304 = vunpack.c.l.b16 %v265
  %v305 = vunpack.c.l.b16 %v266
  %v306 = vunpack.c.l.b16 %v267
  %v307 = vpack.c.b16 %v292, %v291
  %v308 = vpack.c.b16 %v294, %v293
  %v309 = vpack.c.b16 %v296, %v295
  %v310 = vpack.c.b16 %v298, %v297
  %v311 = vpack.c.b16 %v300, %v299
  %v312 = vpack.c.b16 %v302, %v301
  %v313 = vpack.c.b16 %v304, %v303
  %v314 = vpack.c.b16 %v306, %v305
  %323 = vmatprep.subr.bf16.mxu0 0
  %324 = vmatpush1.bf16.msra.mxu0 %v307
  %325 = vmatprep.subr.bf16.mxu0 0
  %326 = vmatpush1.bf16.msra.mxu0 %v308
  %327 = vmatprep.subr.bf16.mxu0 0
  %328 = vmatpush1.bf16.msra.mxu0 %v309
  %329 = vmatprep.subr.bf16.mxu0 0
  %330 = vmatpush1.bf16.msra.mxu0 %v310
  %331 = vmatprep.subr.bf16.mxu0 0
  %332 = vmatpush1.bf16.msra.mxu0 %v311
  %333 = vmatprep.subr.bf16.mxu0 0
  %334 = vmatpush1.bf16.msra.mxu0 %v312
  %335 = vmatprep.subr.bf16.mxu0 0
  %336 = vmatpush1.bf16.msra.mxu0 %v313
  %337 = vmatprep.subr.bf16.mxu0 0
  %338 = vmatpush1.bf16.msra.mxu0 %v314
  %339 = vmatprep.subr.bf16.mxu0 0
  %340 = vmatpush1.bf16.msra.mxu0 0
  %341 = vmatprep.subr.bf16.mxu0 0
  %342 = vmatpush1.bf16.msra.mxu0 0
  %343 = vmatprep.subr.bf16.mxu0 0
  %344 = vmatpush1.bf16.msra.mxu0 0
  %345 = vmatprep.subr.bf16.mxu0 0
  %346 = vmatpush1.bf16.msra.mxu0 0
  %347 = vmatprep.subr.bf16.mxu0 0
  %348 = vmatpush1.bf16.msra.mxu0 0
  %349 = vmatprep.subr.bf16.mxu0 0
  %350 = vmatpush1.bf16.msra.mxu0 0
  %351 = vmatprep.subr.bf16.mxu0 0
  %352 = vmatpush1.bf16.msra.mxu0 0
  %353 = vmatprep.subr.bf16.mxu0 0
  %354 = vmatpush1.bf16.msra.mxu0 0
  %355 = vmatprep.mubr.bf16.mxu0 0
  %356 = vmatmul.mubr.bf16.gmra.mrb[0].mxu0 %v251
  %v357 = vpop.f32.mrb[0].mxu0
  %v358 = vadd.f32 %v273, %v357
  %v359 = vpop.f32.mrb[0].mxu0
  %v360 = vpop.f32.mrb[0].mxu0
  %v361 = vpop.f32.mrb[0].mxu0
  %362 = vdwg.mxu0
  %v363 = vmax.f32 %v358, 0.0
  %v364 = vld [vmem:[%s9] sm:$0x1]
  %v366 = vlaneseq
  %v367 = vshrl.u32 %v366, 7
  %v368 = vsub.s32 0, %v367
  %v369 = vrot.slane %v364, %v368
  %v371 = vmul.f32 %v363, %v369
  %vm372 = vcmask 523264
  %v373 = vsel %vm372, %v371, 0.0
  %374 = vadd.xlane.f32.xlu0 %v373
  %v375 = vpop.xlane.xlu0 %374
  %s376 = sld [smem:[#allocation2]]
  %v377 = vstv %s376
  %v378 = vadd.f32 %v375, %v377
  %vm379 = vcmask 7168
  %380 = vst.msk [vmem:[%s11] sm:$0xff] %vm379, %v378
  // Predicated region
  $region46: #{tpu_custom_call.1} parent=0 // pred_check
    _
  $region47: #{tpu_custom_call.1} parent=0 // pred_check_branch
    %382 = sbr.rel (0) target = $region49
  $region48: #{tpu_custom_call.1} parent=0 // pred_region
    _
  $region49: #{tpu_custom_call.1} parent=0 // pred_fallthru
    _
  // Predicated region
  $region50: #{tpu_custom_call.1} parent=0 // pred_check
    _
  $region51: #{tpu_custom_call.1} parent=0 // pred_check_branch
    %384 = sbr.rel (0) target = $region53
  $region52: #{tpu_custom_call.1} parent=0 // pred_region
    _
  $region53: #{tpu_custom_call.1} parent=0 // pred_fallthru
    _

</llo_original>
